<compile_context>
chip_gen: v6e
topology: v6e:2x2x1
jax: 0.10.0
libtpu: 0.0.40
codegen_flags: <defaults>
</compile_context>

<pallas_src>
import jax
import jax.numpy as jnp
from jax.experimental import pallas as pl
from jax.experimental.pallas import tpu as pltpu

STATE_DIM = 24     # BipedalWalker-v3 observation_space.shape[0]
ACTION_DIM = 4     # BipedalWalker-v3 action_space.shape[0]
H1, H2, H3 = 512, 256, 128

_FLOPS_PER_ROW = 2 * (STATE_DIM * H1 + H1 * H2 + H2 * H3 + H3 * ACTION_DIM)
_TRANS_PER_ROW = H3 + ACTION_DIM          # tanh count per batch row


def _round_up(x, m):
    return ((x + m - 1) // m) * m


def actor_kernel(x_ref,
                 w1_ref, b1_ref,
                 w2_ref, b2_ref,
                 w3_ref, b3_ref,
                 w4_ref, b4_ref,
                 o_ref):
    """One (TB, STATE_DIM) batch tile -> (TB, ACTION_DIM) output tile.

    Weights are bf16 (MXU-native), biases/activations f32, all matmuls
    accumulate in f32.
    """
    bf16 = jnp.bfloat16
    x = x_ref[...]                                   # (TB, 24) f32

    h1 = jnp.dot(x.astype(bf16), w1_ref[...],
                 preferred_element_type=jnp.float32) + b1_ref[...]
    h1 = jnp.maximum(h1, 0.0)                        # relu, f32 on VPU

    h2 = jnp.dot(h1.astype(bf16), w2_ref[...],
                 preferred_element_type=jnp.float32) + b2_ref[...]
    h2 = jnp.maximum(h2, 0.0)                        # relu

    h3 = jnp.dot(h2.astype(bf16), w3_ref[...],
                 preferred_element_type=jnp.float32) + b3_ref[...]
    h3 = jnp.tanh(h3)                                # tanh, f32 on EUP

    y = jnp.dot(h3.astype(bf16), w4_ref[...],
                preferred_element_type=jnp.float32) + b4_ref[...]
    o_ref[...] = jnp.tanh(y)                         # (TB, 4) masked store OK


def actor_forward(x, params, *, tb=256):
    """x: [B, STATE_DIM] float32; params: dict from init_params (f32).

    tb: requested batch tile (multiple of 8; 256 fills v6e/v7x MXU rows).
    """
    B = x.shape[0]
    # Tile size: multiple of 8 (f32 sublane rule), no larger than needed.
    TB = min(tb, _round_up(B, 8))
    B_pad = _round_up(B, TB)
    if B_pad != B:
        x = jnp.pad(x, ((0, B_pad - B), (0, 0)))
    num_tiles = pl.cdiv(B_pad, TB)

    # Cast weights to bf16 at the wrapper (halves weight DMA, bf16 MXU path);
    # biases stay f32.
    w1 = params["w1"].astype(jnp.bfloat16)
    w2 = params["w2"].astype(jnp.bfloat16)
    w3 = params["w3"].astype(jnp.bfloat16)
    w4 = params["w4"].astype(jnp.bfloat16)
    b1, b2, b3, b4 = params["b1"], params["b2"], params["b3"], params["b4"]

    weight_bytes = sum(int(w.size) * 2 for w in (w1, w2, w3, w4))
    bias_bytes = sum(int(b.size) * 4 for b in (b1, b2, b3, b4))
    cost = pl.CostEstimate(
        flops=_FLOPS_PER_ROW * B_pad,
        transcendentals=_TRANS_PER_ROW * B_pad,
        bytes_accessed=(B_pad * STATE_DIM * 4 + B_pad * ACTION_DIM * 4
                        + weight_bytes + bias_bytes),
    )

    # Batch-tiled activations; weights/biases use constant index_maps so they
    # are fetched once and remain VMEM-resident across the whole grid.
    out = pl.pallas_call(
        actor_kernel,
        out_shape=jax.ShapeDtypeStruct((B_pad, ACTION_DIM), jnp.float32),
        grid=(num_tiles,),
        in_specs=[
            pl.BlockSpec((TB, STATE_DIM), lambda i: (i, 0)),    # x tile
            pl.BlockSpec((STATE_DIM, H1), lambda i: (0, 0)),    # w1 (resident)
            pl.BlockSpec((1, H1), lambda i: (0, 0)),            # b1
            pl.BlockSpec((H1, H2), lambda i: (0, 0)),           # w2
            pl.BlockSpec((1, H2), lambda i: (0, 0)),            # b2
            pl.BlockSpec((H2, H3), lambda i: (0, 0)),           # w3
            pl.BlockSpec((1, H3), lambda i: (0, 0)),            # b3
            pl.BlockSpec((H3, ACTION_DIM), lambda i: (0, 0)),   # w4
            pl.BlockSpec((1, ACTION_DIM), lambda i: (0, 0)),    # b4
        ],
        out_specs=pl.BlockSpec((TB, ACTION_DIM), lambda i: (i, 0)),
        compiler_params=pltpu.CompilerParams(
            dimension_semantics=("parallel",)),                 # megacore on v7x
        cost_estimate=cost,
    )(x, w1, b1, w2, b2, w3, b3, w4, b4)

    return out[:B]


def init_params(key):
    """Deterministic synthetic init matching init.normal_(mean=0, std=1)."""
    ks = jax.random.split(key, 8)
    def n(k, shape):
        return jax.random.normal(k, shape, dtype=jnp.float32)
    return {
        # stored as [in, out] so the kernel computes y = x @ W + b
        "w1": n(ks[0], (STATE_DIM, H1)),  "b1": n(ks[1], (1, H1)),
        "w2": n(ks[2], (H1, H2)),         "b2": n(ks[3], (1, H2)),
        "w3": n(ks[4], (H2, H3)),         "b3": n(ks[5], (1, H3)),
        "w4": n(ks[6], (H3, ACTION_DIM)), "b4": n(ks[7], (1, ACTION_DIM)),
    }


def actor_ref(x, p):
    """Pure-JAX reference mirroring the kernel's bf16-weight / f32-accumulate
    numerics (PyTorch semantics up to bf16 weight rounding)."""
    bf16 = jnp.bfloat16
    def dense(a, w, b, act):
        y = jnp.dot(a.astype(bf16), w.astype(bf16),
                    preferred_element_type=jnp.float32) + b
        return act(y)
    h1 = dense(x, p["w1"], p["b1"], jax.nn.relu)
    h2 = dense(h1, p["w2"], p["b2"], jax.nn.relu)
    h3 = dense(h2, p["w3"], p["b3"], jnp.tanh)
    return dense(h3, p["w4"], p["b4"], jnp.tanh)


if __name__ == "__main__":
    key = jax.random.PRNGKey(0)
    pkey, xkey = jax.random.split(key)
    params = init_params(pkey)

    # Small test: ragged batch (20) with an 8-row tile exercises the batch
    # grid (3 steps), weight residency, padding and the final slice.
    batch = 20
    x = jax.random.normal(xkey, (batch, STATE_DIM), dtype=jnp.float32)

    out = actor_forward(x, params, tb=8)
    out = jax.block_until_ready(out)

    ref = actor_ref(x, params)
    assert out.shape == (batch, ACTION_DIM), out.shape
    assert jnp.allclose(out, ref, atol=2e-2, rtol=2e-2), "mismatch vs reference"

    print("KERNEL_OK")
</pallas_src>

<mosaic_0001>
module attributes {stable_mosaic.version = 11 : i64} {
  func.func @actor_kernel(%arg0: i32, %arg1: memref<8x24xf32, #tpu.memory_space<vmem>>, %arg2: memref<24x512xbf16, #tpu.memory_space<vmem>>, %arg3: memref<1x512xf32, #tpu.memory_space<vmem>>, %arg4: memref<512x256xbf16, #tpu.memory_space<vmem>>, %arg5: memref<1x256xf32, #tpu.memory_space<vmem>>, %arg6: memref<256x128xbf16, #tpu.memory_space<vmem>>, %arg7: memref<1x128xf32, #tpu.memory_space<vmem>>, %arg8: memref<128x4xbf16, #tpu.memory_space<vmem>>, %arg9: memref<1x4xf32, #tpu.memory_space<vmem>>, %arg10: memref<8x4xf32, #tpu.memory_space<vmem>>) attributes {dimension_semantics = [#tpu.dimension_semantics<parallel>], iteration_bounds = array<i64: 3>, scalar_prefetch = 0 : i64, scratch_operands = 0 : i64, tpu.core_type = #tpu.core_type<tc>, window_params = [{transform_indices = @transform_0, window_bounds = array<i64: 8, 24>}, {pipeline_mode = #tpu.pipeline_mode<synchronous>, transform_indices = @transform_1, window_bounds = array<i64: 24, 512>}, {pipeline_mode = #tpu.pipeline_mode<synchronous>, transform_indices = @transform_2, window_bounds = array<i64: 1, 512>}, {pipeline_mode = #tpu.pipeline_mode<synchronous>, transform_indices = @transform_3, window_bounds = array<i64: 512, 256>}, {pipeline_mode = #tpu.pipeline_mode<synchronous>, transform_indices = @transform_4, window_bounds = array<i64: 1, 256>}, {pipeline_mode = #tpu.pipeline_mode<synchronous>, transform_indices = @transform_5, window_bounds = array<i64: 256, 128>}, {pipeline_mode = #tpu.pipeline_mode<synchronous>, transform_indices = @transform_6, window_bounds = array<i64: 1, 128>}, {pipeline_mode = #tpu.pipeline_mode<synchronous>, transform_indices = @transform_7, window_bounds = array<i64: 128, 4>}, {pipeline_mode = #tpu.pipeline_mode<synchronous>, transform_indices = @transform_8, window_bounds = array<i64: 1, 4>}, {transform_indices = @transform_9, window_bounds = array<i64: 8, 4>}]} {
    %c0 = arith.constant 0 : index
    %c0_0 = arith.constant 0 : index
    %0 = vector.load %arg1[%c0, %c0_0] : memref<8x24xf32, #tpu.memory_space<vmem>>, vector<8x24xf32>
    %1 = arith.truncf %0 : vector<8x24xf32> to vector<8x24xbf16>
    %c0_1 = arith.constant 0 : index
    %c0_2 = arith.constant 0 : index
    %2 = vector.load %arg2[%c0_1, %c0_2] : memref<24x512xbf16, #tpu.memory_space<vmem>>, vector<24x512xbf16>
    %cst = arith.constant dense<0.000000e+00> : vector<8x512xf32>
    %3 = tpu.matmul %1, %2, %cst {dimension_numbers = #tpu.dot_dimension_numbers<[1], [0], [0], [1], [0, 0, 1, 1], [], []>} : vector<8x24xbf16>, vector<24x512xbf16>, vector<8x512xf32> -> vector<8x512xf32>
    %c0_3 = arith.constant 0 : index
    %c0_4 = arith.constant 0 : index
    %4 = vector.load %arg3[%c0_3, %c0_4] : memref<1x512xf32, #tpu.memory_space<vmem>>, vector<1x512xf32>
    %5 = vector.broadcast %4 : vector<1x512xf32> to vector<8x512xf32>
    %6 = arith.addf %3, %5 : vector<8x512xf32>
    %cst_5 = arith.constant 0.000000e+00 : f32
    %7 = vector.broadcast %cst_5 : f32 to vector<8x512xf32>
    %8 = arith.maximumf %6, %7 : vector<8x512xf32>
    %9 = arith.truncf %8 : vector<8x512xf32> to vector<8x512xbf16>
    %c0_6 = arith.constant 0 : index
    %c0_7 = arith.constant 0 : index
    %10 = vector.load %arg4[%c0_6, %c0_7] : memref<512x256xbf16, #tpu.memory_space<vmem>>, vector<512x256xbf16>
    %cst_8 = arith.constant dense<0.000000e+00> : vector<8x256xf32>
    %11 = tpu.matmul %9, %10, %cst_8 {dimension_numbers = #tpu.dot_dimension_numbers<[1], [0], [0], [1], [0, 0, 1, 1], [], []>} : vector<8x512xbf16>, vector<512x256xbf16>, vector<8x256xf32> -> vector<8x256xf32>
    %c0_9 = arith.constant 0 : index
    %c0_10 = arith.constant 0 : index
    %12 = vector.load %arg5[%c0_9, %c0_10] : memref<1x256xf32, #tpu.memory_space<vmem>>, vector<1x256xf32>
    %13 = vector.broadcast %12 : vector<1x256xf32> to vector<8x256xf32>
    %14 = arith.addf %11, %13 : vector<8x256xf32>
    %cst_11 = arith.constant 0.000000e+00 : f32
    %15 = vector.broadcast %cst_11 : f32 to vector<8x256xf32>
    %16 = arith.maximumf %14, %15 : vector<8x256xf32>
    %17 = arith.truncf %16 : vector<8x256xf32> to vector<8x256xbf16>
    %c0_12 = arith.constant 0 : index
    %c0_13 = arith.constant 0 : index
    %18 = vector.load %arg6[%c0_12, %c0_13] : memref<256x128xbf16, #tpu.memory_space<vmem>>, vector<256x128xbf16>
    %cst_14 = arith.constant dense<0.000000e+00> : vector<8x128xf32>
    %19 = tpu.matmul %17, %18, %cst_14 {dimension_numbers = #tpu.dot_dimension_numbers<[1], [0], [0], [1], [0, 0, 1, 1], [], []>} : vector<8x256xbf16>, vector<256x128xbf16>, vector<8x128xf32> -> vector<8x128xf32>
    %c0_15 = arith.constant 0 : index
    %c0_16 = arith.constant 0 : index
    %20 = vector.load %arg7[%c0_15, %c0_16] : memref<1x128xf32, #tpu.memory_space<vmem>>, vector<1x128xf32>
    %21 = vector.broadcast %20 : vector<1x128xf32> to vector<8x128xf32>
    %22 = arith.addf %19, %21 : vector<8x128xf32>
    %23 = math.tanh %22 : vector<8x128xf32>
    %24 = arith.truncf %23 : vector<8x128xf32> to vector<8x128xbf16>
    %c0_17 = arith.constant 0 : index
    %c0_18 = arith.constant 0 : index
    %25 = vector.load %arg8[%c0_17, %c0_18] : memref<128x4xbf16, #tpu.memory_space<vmem>>, vector<128x4xbf16>
    %cst_19 = arith.constant dense<0.000000e+00> : vector<8x4xf32>
    %26 = tpu.matmul %24, %25, %cst_19 {dimension_numbers = #tpu.dot_dimension_numbers<[1], [0], [0], [1], [0, 0, 1, 1], [], []>} : vector<8x128xbf16>, vector<128x4xbf16>, vector<8x4xf32> -> vector<8x4xf32>
    %c0_20 = arith.constant 0 : index
    %c0_21 = arith.constant 0 : index
    %27 = vector.load %arg9[%c0_20, %c0_21] : memref<1x4xf32, #tpu.memory_space<vmem>>, vector<1x4xf32>
    %28 = vector.broadcast %27 : vector<1x4xf32> to vector<8x4xf32>
    %29 = arith.addf %26, %28 : vector<8x4xf32>
    %30 = math.tanh %29 : vector<8x4xf32>
    %c0_22 = arith.constant 0 : index
    %c0_23 = arith.constant 0 : index
    %31 = vector.load %arg10[%c0_22, %c0_23] : memref<8x4xf32, #tpu.memory_space<vmem>>, vector<8x4xf32>
    tpu.vector_store %arg10[%c0_22, %c0_23], %30 {strides = array<i32>} : memref<8x4xf32, #tpu.memory_space<vmem>>, vector<8x4xf32>,
    return
  }
  func.func @transform_0(%arg0: i32) -> (i32, i32) {
    %c0_i32 = arith.constant 0 : i32
    %c0_i32_0 = arith.constant 0 : i32
    return %arg0, %c0_i32 : i32, i32
  }
  func.func @transform_1(%arg0: i32) -> (i32, i32) {
    %c0_i32 = arith.constant 0 : i32
    %c0_i32_0 = arith.constant 0 : i32
    %c0_i32_1 = arith.constant 0 : i32
    return %c0_i32, %c0_i32_0 : i32, i32
  }
  func.func @transform_2(%arg0: i32) -> (i32, i32) {
    %c0_i32 = arith.constant 0 : i32
    %c0_i32_0 = arith.constant 0 : i32
    %c0_i32_1 = arith.constant 0 : i32
    return %c0_i32, %c0_i32_0 : i32, i32
  }
  func.func @transform_3(%arg0: i32) -> (i32, i32) {
    %c0_i32 = arith.constant 0 : i32
    %c0_i32_0 = arith.constant 0 : i32
    %c0_i32_1 = arith.constant 0 : i32
    return %c0_i32, %c0_i32_0 : i32, i32
  }
  func.func @transform_4(%arg0: i32) -> (i32, i32) {
    %c0_i32 = arith.constant 0 : i32
    %c0_i32_0 = arith.constant 0 : i32
    %c0_i32_1 = arith.constant 0 : i32
    return %c0_i32, %c0_i32_0 : i32, i32
  }
  func.func @transform_5(%arg0: i32) -> (i32, i32) {
    %c0_i32 = arith.constant 0 : i32
    %c0_i32_0 = arith.constant 0 : i32
    %c0_i32_1 = arith.constant 0 : i32
    return %c0_i32, %c0_i32_0 : i32, i32
  }
  func.func @transform_6(%arg0: i32) -> (i32, i32) {
    %c0_i32 = arith.constant 0 : i32
    %c0_i32_0 = arith.constant 0 : i32
    %c0_i32_1 = arith.constant 0 : i32
    return %c0_i32, %c0_i32_0 : i32, i32
  }
  func.func @transform_7(%arg0: i32) -> (i32, i32) {
    %c0_i32 = arith.constant 0 : i32
    %c0_i32_0 = arith.constant 0 : i32
    %c0_i32_1 = arith.constant 0 : i32
    return %c0_i32, %c0_i32_0 : i32, i32
  }
  func.func @transform_8(%arg0: i32) -> (i32, i32) {
    %c0_i32 = arith.constant 0 : i32
    %c0_i32_0 = arith.constant 0 : i32
    %c0_i32_1 = arith.constant 0 : i32
    return %c0_i32, %c0_i32_0 : i32, i32
  }
  func.func @transform_9(%arg0: i32) -> (i32, i32) {
    %c0_i32 = arith.constant 0 : i32
    %c0_i32_0 = arith.constant 0 : i32
    return %arg0, %c0_i32 : i32, i32
  }
}

</mosaic_0001>

<llo_original>
// kernel: tpu_custom_call.1
$region0: #{tpu_custom_call.1}
  #allocation0 [shape = 'u32[]', space=smem, size = 0x4, offset = 0x4, fixed_abs, tag = 'smem constant byte address 0x4 - core index']
  #allocation1 [shape = 'u32[144,128]{1,0:T(1,128)}', space=vmem, size = 0x12000, scoped, tag = 'internal scratch']
  %s0 = inlined_call_operand.hbm [shape: f32[24,24], index: 0, kind: input, shape index: {}]
  %s1 = inlined_call_operand.vmem [shape: bf16[24,512], index: 1, kind: input, shape index: {}]
  %s2 = inlined_call_operand.vmem [shape: f32[1,512], index: 2, kind: input, shape index: {}]
  %s3 = inlined_call_operand.hbm [shape: bf16[512,256], index: 3, kind: input, shape index: {}]
  %s4 = inlined_call_operand.vmem [shape: f32[1,256], index: 4, kind: input, shape index: {}]
  %s5 = inlined_call_operand.hbm [shape: bf16[256,128], index: 5, kind: input, shape index: {}]
  %s6 = inlined_call_operand.vmem [shape: f32[1,128], index: 6, kind: input, shape index: {}]
  %s7 = inlined_call_operand.vmem [shape: bf16[128,4], index: 7, kind: input, shape index: {}]
  %s8 = inlined_call_operand.vmem [shape: f32[1,4], index: 8, kind: input, shape index: {}]
  %s9 = inlined_call_operand.vmem [shape: f32[24,4], index: 9, kind: output, shape index: {}]
  %s10 = sld [smem:[#allocation0]]
  $region81: #{tpu_custom_call.1} parent=0
    _
  %s12 = ssub.s32 1, %s10
  %s13 = scalar_select 0, %s12, %s10
  $region1: #{tpu_custom_call.1} parent=0
    #allocation2 [shape = 'u8[8192]{0}', space=vmem, size = 0x2000, scoped, tag = 'input window, operand 0']
    #allocation3 [shape = 's32[2]{0}', space=sflag, size = 0x8, scoped, tag = 'scoped memory for tpu_custom_call.1']
    #allocation4 [shape = 'u8[262144]{0}', space=vmem, size = 0x40000, scoped, tag = 'input window, operand 3, single buffered']
    #allocation5 [shape = 's32[1]{0}', space=sflag, size = 0x4, scoped, tag = 'scoped memory for tpu_custom_call.1']
    #allocation6 [shape = 'u8[65536]{0}', space=vmem, size = 0x10000, scoped, tag = 'input window, operand 5, single buffered']
    %14 = vsyncpa [#allocation3], 0
    %s15 = scalar_lea.sflag [#allocation3], 1
    %16 = vsyncpa %s15, 0
    %17 = vsyncpa [#allocation5], 0
    loop: start=0, step=1, limit=5
    $region2: #{tpu_custom_call.1} parent=1 // loop_pre_header
      _
    $region3: #{tpu_custom_call.1} parent=1 // loop_header
      %s19 = sphi 0, %s23
      %p20 = scmp.ge.s32.totalorder %s19, 5
      %s29 = sphi 0, %s31
      %s32 = sphi 0, %s29
      %s33 = sphi 0, %s32
      %s49 = sphi 0, %s33
      %s53 = sphi 0, %s53
      %s55 = sphi 0, %s53
      %s56 = sphi 0, %s55
      %s70 = sphi 0, %s56
      %s74 = sphi 0, %s74
      %s76 = sphi 0, %s74
      %s77 = sphi 0, %s76
      %s91 = sphi 0, %s77
      %s95 = sphi 0, %s95
      %s97 = sphi 0, %s95
      %s98 = sphi 0, %s97
      %s112 = sphi 0, %s98
      %s116 = sphi 0, %s116
      %s118 = sphi 0, %s116
      %s119 = sphi 0, %s118
      %s133 = sphi 0, %s119
      %s137 = sphi 0, %s137
      %s139 = sphi 0, %s137
      %s140 = sphi 0, %s139
      %s154 = sphi 0, %s140
      %s158 = sphi 0, %s158
      %s160 = sphi 0, %s158
      %s161 = sphi 0, %s160
      %s175 = sphi 0, %s161
      %s179 = sphi 0, %s179
      %s181 = sphi 0, %s179
      %s182 = sphi 0, %s181
      %s196 = sphi 0, %s182
      %s200 = sphi 0, %s200
      %s202 = sphi 0, %s200
      %s203 = sphi 0, %s202
      %s217 = sphi 0, %s203
      %s223 = sphi 0, %s225
      %s226 = sphi 0, %s223
      %s227 = sphi 0, %s226
      %s243 = sphi 0, %s227
    $region4: #{tpu_custom_call.1} parent=1 // loop_header_branch
      %22 = sbr.rel (%p20) target = $region8
    $region5: #{tpu_custom_call.1} parent=1 // loop_body
      %s24 = ssub.s32 %s19, 1
      %s25 = ssub.s32 %s19, 2
      %s26 = sadd.s32 %s19, 1
      %s27 = ssub.s32 %s19, %s26
      %p28 = scmp.eq.s32.totalorder %s27, 0
      %s30 = sadd.s32 %s29, 1
      %s31 = scalar_select %p28, %s29, %s30
      %p34 = pneg %p28
      %p35 = scmp.eq.s32.totalorder %s19, 2
      %p36 = por %p34, %p35
      %p37 = scmp.ne.s32.totalorder %s29, %s32
      %p38 = scmp.eq.s32.totalorder %s19, 0
      %p39 = por %p37, %p38
      %p40 = scmp.ne.s32.totalorder %s29, %s32
      %p41 = scmp.eq.s32.totalorder %s24, 2
      %p42 = por %p40, %p41
      %p43 = scmp.ne.s32.totalorder %s32, %s33
      %p44 = scmp.eq.s32.totalorder %s24, 0
      %p45 = por %p43, %p44
      %p46 = scmp.ne.s32.totalorder %s32, %s33
      %p47 = scmp.eq.s32.totalorder %s25, 2
      %p48 = por %p46, %p47
      %p50 = scmp.ne.s32.totalorder %s33, %s49
      %p51 = scmp.eq.s32.totalorder %s25, 0
      %p52 = por %p50, %p51
      %s54 = sadd.s32 %s53, 1
      %p57 = scmp.eq.s32.totalorder %s19, 2
      %p58 = scmp.ne.s32.totalorder %s53, %s55
      %p59 = scmp.eq.s32.totalorder %s19, 0
      %p60 = por %p58, %p59
      %p61 = scmp.ne.s32.totalorder %s53, %s55
      %p62 = scmp.eq.s32.totalorder %s24, 2
      %p63 = por %p61, %p62
      %p64 = scmp.ne.s32.totalorder %s55, %s56
      %p65 = scmp.eq.s32.totalorder %s24, 0
      %p66 = por %p64, %p65
      %p67 = scmp.ne.s32.totalorder %s55, %s56
      %p68 = scmp.eq.s32.totalorder %s25, 2
      %p69 = por %p67, %p68
      %p71 = scmp.ne.s32.totalorder %s56, %s70
      %p72 = scmp.eq.s32.totalorder %s25, 0
      %p73 = por %p71, %p72
      %s75 = sadd.s32 %s74, 1
      %p78 = scmp.eq.s32.totalorder %s19, 2
      %p79 = scmp.ne.s32.totalorder %s74, %s76
      %p80 = scmp.eq.s32.totalorder %s19, 0
      %p81 = por %p79, %p80
      %p82 = scmp.ne.s32.totalorder %s74, %s76
      %p83 = scmp.eq.s32.totalorder %s24, 2
      %p84 = por %p82, %p83
      %p85 = scmp.ne.s32.totalorder %s76, %s77
      %p86 = scmp.eq.s32.totalorder %s24, 0
      %p87 = por %p85, %p86
      %p88 = scmp.ne.s32.totalorder %s76, %s77
      %p89 = scmp.eq.s32.totalorder %s25, 2
      %p90 = por %p88, %p89
      %p92 = scmp.ne.s32.totalorder %s77, %s91
      %p93 = scmp.eq.s32.totalorder %s25, 0
      %p94 = por %p92, %p93
      %s96 = sadd.s32 %s95, 1
      %p99 = scmp.eq.s32.totalorder %s19, 2
      %p100 = scmp.ne.s32.totalorder %s95, %s97
      %p101 = scmp.eq.s32.totalorder %s19, 0
      %p102 = por %p100, %p101
      %p103 = scmp.ne.s32.totalorder %s95, %s97
      %p104 = scmp.eq.s32.totalorder %s24, 2
      %p105 = por %p103, %p104
      %p106 = scmp.ne.s32.totalorder %s97, %s98
      %p107 = scmp.eq.s32.totalorder %s24, 0
      %p108 = por %p106, %p107
      %p109 = scmp.ne.s32.totalorder %s97, %s98
      %p110 = scmp.eq.s32.totalorder %s25, 2
      %p111 = por %p109, %p110
      %p113 = scmp.ne.s32.totalorder %s98, %s112
      %p114 = scmp.eq.s32.totalorder %s25, 0
      %p115 = por %p113, %p114
      %s117 = sadd.s32 %s116, 1
      %p120 = scmp.eq.s32.totalorder %s19, 2
      %p121 = scmp.ne.s32.totalorder %s116, %s118
      %p122 = scmp.eq.s32.totalorder %s19, 0
      %p123 = por %p121, %p122
      %p124 = scmp.ne.s32.totalorder %s116, %s118
      %p125 = scmp.eq.s32.totalorder %s24, 2
      %p126 = por %p124, %p125
      %p127 = scmp.ne.s32.totalorder %s118, %s119
      %p128 = scmp.eq.s32.totalorder %s24, 0
      %p129 = por %p127, %p128
      %p130 = scmp.ne.s32.totalorder %s118, %s119
      %p131 = scmp.eq.s32.totalorder %s25, 2
      %p132 = por %p130, %p131
      %p134 = scmp.ne.s32.totalorder %s119, %s133
      %p135 = scmp.eq.s32.totalorder %s25, 0
      %p136 = por %p134, %p135
      %s138 = sadd.s32 %s137, 1
      %p141 = scmp.eq.s32.totalorder %s19, 2
      %p142 = scmp.ne.s32.totalorder %s137, %s139
      %p143 = scmp.eq.s32.totalorder %s19, 0
      %p144 = por %p142, %p143
      %p145 = scmp.ne.s32.totalorder %s137, %s139
      %p146 = scmp.eq.s32.totalorder %s24, 2
      %p147 = por %p145, %p146
      %p148 = scmp.ne.s32.totalorder %s139, %s140
      %p149 = scmp.eq.s32.totalorder %s24, 0
      %p150 = por %p148, %p149
      %p151 = scmp.ne.s32.totalorder %s139, %s140
      %p152 = scmp.eq.s32.totalorder %s25, 2
      %p153 = por %p151, %p152
      %p155 = scmp.ne.s32.totalorder %s140, %s154
      %p156 = scmp.eq.s32.totalorder %s25, 0
      %p157 = por %p155, %p156
      %s159 = sadd.s32 %s158, 1
      %p162 = scmp.eq.s32.totalorder %s19, 2
      %p163 = scmp.ne.s32.totalorder %s158, %s160
      %p164 = scmp.eq.s32.totalorder %s19, 0
      %p165 = por %p163, %p164
      %p166 = scmp.ne.s32.totalorder %s158, %s160
      %p167 = scmp.eq.s32.totalorder %s24, 2
      %p168 = por %p166, %p167
      %p169 = scmp.ne.s32.totalorder %s160, %s161
      %p170 = scmp.eq.s32.totalorder %s24, 0
      %p171 = por %p169, %p170
      %p172 = scmp.ne.s32.totalorder %s160, %s161
      %p173 = scmp.eq.s32.totalorder %s25, 2
      %p174 = por %p172, %p173
      %p176 = scmp.ne.s32.totalorder %s161, %s175
      %p177 = scmp.eq.s32.totalorder %s25, 0
      %p178 = por %p176, %p177
      %s180 = sadd.s32 %s179, 1
      %p183 = scmp.eq.s32.totalorder %s19, 2
      %p184 = scmp.ne.s32.totalorder %s179, %s181
      %p185 = scmp.eq.s32.totalorder %s19, 0
      %p186 = por %p184, %p185
      %p187 = scmp.ne.s32.totalorder %s179, %s181
      %p188 = scmp.eq.s32.totalorder %s24, 2
      %p189 = por %p187, %p188
      %p190 = scmp.ne.s32.totalorder %s181, %s182
      %p191 = scmp.eq.s32.totalorder %s24, 0
      %p192 = por %p190, %p191
      %p193 = scmp.ne.s32.totalorder %s181, %s182
      %p194 = scmp.eq.s32.totalorder %s25, 2
      %p195 = por %p193, %p194
      %p197 = scmp.ne.s32.totalorder %s182, %s196
      %p198 = scmp.eq.s32.totalorder %s25, 0
      %p199 = por %p197, %p198
      %s201 = sadd.s32 %s200, 1
      %p204 = scmp.eq.s32.totalorder %s19, 2
      %p205 = scmp.ne.s32.totalorder %s200, %s202
      %p206 = scmp.eq.s32.totalorder %s19, 0
      %p207 = por %p205, %p206
      %p208 = scmp.ne.s32.totalorder %s200, %s202
      %p209 = scmp.eq.s32.totalorder %s24, 2
      %p210 = por %p208, %p209
      %p211 = scmp.ne.s32.totalorder %s202, %s203
      %p212 = scmp.eq.s32.totalorder %s24, 0
      %p213 = por %p211, %p212
      %p214 = scmp.ne.s32.totalorder %s202, %s203
      %p215 = scmp.eq.s32.totalorder %s25, 2
      %p216 = por %p214, %p215
      %p218 = scmp.ne.s32.totalorder %s203, %s217
      %p219 = scmp.eq.s32.totalorder %s25, 0
      %p220 = por %p218, %p219
      %s221 = ssub.s32 %s19, %s26
      %p222 = scmp.eq.s32.totalorder %s221, 0
      %s224 = sadd.s32 %s223, 1
      %s225 = scalar_select %p222, %s223, %s224
      %p228 = pneg %p222
      %p229 = scmp.eq.s32.totalorder %s19, 2
      %p230 = por %p228, %p229
      %p231 = scmp.ne.s32.totalorder %s223, %s226
      %p232 = scmp.eq.s32.totalorder %s19, 0
      %p233 = por %p231, %p232
      %p234 = scmp.ne.s32.totalorder %s223, %s226
      %p235 = scmp.eq.s32.totalorder %s24, 2
      %p236 = por %p234, %p235
      %p237 = scmp.ne.s32.totalorder %s226, %s227
      %p238 = scmp.eq.s32.totalorder %s24, 0
      %p239 = por %p237, %p238
      %p240 = scmp.ne.s32.totalorder %s226, %s227
      %p241 = scmp.eq.s32.totalorder %s25, 2
      %p242 = por %p240, %p241
      %p244 = scmp.ne.s32.totalorder %s227, %s243
      %p245 = scmp.eq.s32.totalorder %s25, 0
      %p246 = por %p244, %p245
      %p247 = scmp.le.s32.totalorder 1, %s19
      %p248 = scmp.lt.s32.totalorder %s19, 4
      %p249 = pnand %p247, %p248
      %p250 = pneg %p249
      // Predicated region
      $region9: #{tpu_custom_call.1} parent=5 // pred_check
        _
      $region10: #{tpu_custom_call.1} parent=5 // pred_check_branch
        %252 = sbr.rel (%p249) target = $region12
      $region11: #{tpu_custom_call.1} parent=5 // pred_region
        %s253 = ssub.s32 %s19, 1
        // Predicated region
        $region13: #{tpu_custom_call.1} parent=11 // pred_check
          %p254 = pneg %p66
        $region14: #{tpu_custom_call.1} parent=11 // pred_check_branch
          %256 = sbr.rel (%p254) target = $region16
        $region15: #{tpu_custom_call.1} parent=11 // pred_region
          _
        $region16: #{tpu_custom_call.1} parent=11 // pred_fallthru
          _
        // Predicated region
        $region17: #{tpu_custom_call.1} parent=11 // pred_check
          %p257 = pneg %p87
        $region18: #{tpu_custom_call.1} parent=11 // pred_check_branch
          %259 = sbr.rel (%p257) target = $region20
        $region19: #{tpu_custom_call.1} parent=11 // pred_region
          _
        $region20: #{tpu_custom_call.1} parent=11 // pred_fallthru
          _
        // Predicated region
        $region21: #{tpu_custom_call.1} parent=11 // pred_check
          %p260 = pneg %p108
        $region22: #{tpu_custom_call.1} parent=11 // pred_check_branch
          %262 = sbr.rel (%p260) target = $region24
        $region23: #{tpu_custom_call.1} parent=11 // pred_region
          %s264 = ssub.s32 8192, 8192
          %265 = vsyncadd [#allocation5], %s264
          %s266 = sshll.u32 [#allocation4], 4
          %s267 = int_to_ptr.vmem [resolvable:$true] %s266
          %272 = dma.hbm_to_vmem [thread:$0]  %s3, 8192, %s267, [#allocation5], 128, 128, 8
        $region24: #{tpu_custom_call.1} parent=11 // pred_fallthru
          _
        // Predicated region
        $region25: #{tpu_custom_call.1} parent=11 // pred_check
          %p273 = pneg %p129
        $region26: #{tpu_custom_call.1} parent=11 // pred_check_branch
          %275 = sbr.rel (%p273) target = $region28
        $region27: #{tpu_custom_call.1} parent=11 // pred_region
          _
        $region28: #{tpu_custom_call.1} parent=11 // pred_fallthru
          _
        // Predicated region
        $region29: #{tpu_custom_call.1} parent=11 // pred_check
          %p276 = pneg %p150
        $region30: #{tpu_custom_call.1} parent=11 // pred_check_branch
          %278 = sbr.rel (%p276) target = $region32
        $region31: #{tpu_custom_call.1} parent=11 // pred_region
          %s280 = ssub.s32 2048, 2048
          %281 = vsyncadd [#allocation5], %s280
          %s282 = sshll.u32 [#allocation6], 4
          %s283 = int_to_ptr.vmem [resolvable:$true] %s282
          %288 = dma.hbm_to_vmem [thread:$0]  %s5, 2048, %s283, [#allocation5], 64, 64, 4
        $region32: #{tpu_custom_call.1} parent=11 // pred_fallthru
          _
        // Predicated region
        $region33: #{tpu_custom_call.1} parent=11 // pred_check
          %p289 = pneg %p171
        $region34: #{tpu_custom_call.1} parent=11 // pred_check_branch
          %291 = sbr.rel (%p289) target = $region36
        $region35: #{tpu_custom_call.1} parent=11 // pred_region
          _
        $region36: #{tpu_custom_call.1} parent=11 // pred_fallthru
          _
        // Predicated region
        $region37: #{tpu_custom_call.1} parent=11 // pred_check
          %p292 = pneg %p192
        $region38: #{tpu_custom_call.1} parent=11 // pred_check_branch
          %294 = sbr.rel (%p292) target = $region40
        $region39: #{tpu_custom_call.1} parent=11 // pred_region
          _
        $region40: #{tpu_custom_call.1} parent=11 // pred_fallthru
          _
        // Predicated region
        $region41: #{tpu_custom_call.1} parent=11 // pred_check
          %p295 = pneg %p213
        $region42: #{tpu_custom_call.1} parent=11 // pred_check_branch
          %297 = sbr.rel (%p295) target = $region44
        $region43: #{tpu_custom_call.1} parent=11 // pred_region
          _
        $region44: #{tpu_custom_call.1} parent=11 // pred_fallthru
          _
      $region12: #{tpu_custom_call.1} parent=5 // pred_fallthru
        _
      %p298 = scmp.lt.s32.totalorder %s19, 3
      // Predicated region
      $region45: #{tpu_custom_call.1} parent=5 // pred_check
        %p299 = pneg %p298
      $region46: #{tpu_custom_call.1} parent=5 // pred_check_branch
        %301 = sbr.rel (%p299) target = $region48
      $region47: #{tpu_custom_call.1} parent=5 // pred_region
        // Predicated region
        $region49: #{tpu_custom_call.1} parent=47 // pred_check
          %p302 = pneg %p39
        $region50: #{tpu_custom_call.1} parent=47 // pred_check_branch
          %304 = sbr.rel (%p302) target = $region52
        $region51: #{tpu_custom_call.1} parent=47 // pred_region
          %s305 = sand.u32 %s29, 1
          %s306 = scalar_lea.sflag [#allocation3], %s305
          %s307 = sand.u32 %s29, 1
          %s308 = smul.addr %s307, 8
          %s309 = scalar_lea.vmem [#allocation2], %s308
          %s311 = ssub.s32 128, 128
          %312 = vsyncadd %s306, %s311
          %s313 = smul.addr %s19, 128
          %s314 = scalar_lea.hbm %s0, %s313
          %s316 = sshll.u32 %s309, 4
          %s317 = int_to_ptr.vmem [resolvable:$true] %s316
          %319 = dma.hbm_to_vmem [thread:$0]  %s314, 128, %s317, %s306
        $region52: #{tpu_custom_call.1} parent=47 // pred_fallthru
          _
      $region48: #{tpu_custom_call.1} parent=5 // pred_fallthru
        _
      %p320 = scmp.le.s32.totalorder 1, %s19
      %p321 = scmp.lt.s32.totalorder %s19, 4
      %p322 = pnand %p320, %p321
      %p323 = pneg %p322
      // Predicated region
      $region53: #{tpu_custom_call.1} parent=5 // pred_check
        _
      $region54: #{tpu_custom_call.1} parent=5 // pred_check_branch
        %325 = sbr.rel (%p322) target = $region56
      $region55: #{tpu_custom_call.1} parent=5 // pred_region
        %s326 = ssub.s32 %s19, 1
        %s327 = sand.u32 %s32, 1
        %s328 = scalar_lea.sflag [#allocation3], %s327
        %s329 = sand.u32 %s32, 1
        %s330 = smul.addr %s329, 8
        %s331 = scalar_lea.vmem [#allocation2], %s330
        // Predicated region
        $region57: #{tpu_custom_call.1} parent=55 // pred_check
          %p332 = pneg %p45
        $region58: #{tpu_custom_call.1} parent=55 // pred_check_branch
          %334 = sbr.rel (%p332) target = $region60
        $region59: #{tpu_custom_call.1} parent=55 // pred_region
          %335 = dma.done %s328, 128
        $region60: #{tpu_custom_call.1} parent=55 // pred_fallthru
          _
        // Predicated region
        $region61: #{tpu_custom_call.1} parent=55 // pred_check
          %p336 = pneg %p108
        $region62: #{tpu_custom_call.1} parent=55 // pred_check_branch
          %338 = sbr.rel (%p336) target = $region64
        $region63: #{tpu_custom_call.1} parent=55 // pred_region
          %339 = dma.done [#allocation5], 8192
        $region64: #{tpu_custom_call.1} parent=55 // pred_fallthru
          _
        // Predicated region
        $region65: #{tpu_custom_call.1} parent=55 // pred_check
          %p340 = pneg %p150
        $region66: #{tpu_custom_call.1} parent=55 // pred_check_branch
          %342 = sbr.rel (%p340) target = $region68
        $region67: #{tpu_custom_call.1} parent=55 // pred_region
          %343 = dma.done [#allocation5], 2048
        $region68: #{tpu_custom_call.1} parent=55 // pred_fallthru
          _
        %s344 = sand.u32 %s32, 1
        %s345 = scalar_lea.sflag [#allocation3], %s344
        %s346 = sand.u32 %s32, 1
        %s347 = smul.addr %s346, 8
        %s348 = scalar_lea.vmem [#allocation2], %s347
        %p349 = pneg %p45
        %p350 = pneg %p42
        %p351 = pneg %p66
        %p352 = pneg %p63
        %p353 = pneg %p87
        %p354 = pneg %p84
        %p355 = pneg %p108
        %p356 = pneg %p105
        %p357 = pneg %p129
        %p358 = pneg %p126
        %p359 = pneg %p150
        %p360 = pneg %p147
        %p361 = pneg %p171
        %p362 = pneg %p168
        %p363 = pneg %p192
        %p364 = pneg %p189
        %p365 = pneg %p213
        %p366 = pneg %p210
        %p367 = pneg %p239
        %p368 = pneg %p236
        %p369 = scmp.lt.s32.totalorder %s24, 2
        %s370 = scalar_select %p369, %s24, 2
        %s371 = smul.addr %s370, 8
        %s372 = scalar_lea.vmem %s9, %s371
        %p373 = scmp.lt.s32.totalorder %s24, 2
        %s374 = scalar_select %p373, %s24, 2
        %s375 = smul.addr %s374, 8
        %s376 = scalar_lea.vmem %s9, %s375
        %v378 = vld [vmem:[%s331] sm:$0xff]
        %v379 = vpack.c.bf16 %v378, %v378
        %v380 = vld [vmem:[%s1] sm:$0xff]
        %v381 = vld [vmem:[%s1 + $0x8] sm:$0xff]
        %v382 = vld [vmem:[%s1 + $0x10] sm:$0xff]
        %v383 = vld [vmem:[%s1 + $0x18] sm:$0xff]
        %v384 = vld [vmem:[%s1 + $0x20] sm:$0xff]
        %v385 = vld [vmem:[%s1 + $0x28] sm:$0xff]
        %v386 = vld [vmem:[%s2] sm:$0xf]
        %v388 = vlaneseq
        %v389 = vshrl.u32 %v388, 7
        %v390 = vsub.s32 0, %v389
        %v391 = vrot.slane %v386, %v390
        %v392 = vlaneseq
        %v393 = vshrl.u32 %v392, 7
        %v394 = vsub.s32 1, %v393
        %v395 = vrot.slane %v386, %v394
        %v396 = vlaneseq
        %v397 = vshrl.u32 %v396, 7
        %v398 = vsub.s32 2, %v397
        %v399 = vrot.slane %v386, %v398
        %v400 = vlaneseq
        %v401 = vshrl.u32 %v400, 7
        %v402 = vsub.s32 3, %v401
        %v403 = vrot.slane %v386, %v402
        %v414 = vunpack.c.l.b16 %v380
        %v415 = vunpack.c.h.b16 %v380
        %v416 = vunpack.c.l.b16 %v381
        %v417 = vunpack.c.h.b16 %v381
        %v418 = vunpack.c.l.b16 %v382
        %v419 = vunpack.c.h.b16 %v382
        %v420 = vunpack.c.l.b16 %v383
        %v421 = vunpack.c.h.b16 %v383
        %v422 = vunpack.c.l.b16 %v384
        %v423 = vunpack.c.h.b16 %v384
        %v424 = vunpack.c.l.b16 %v385
        %v425 = vunpack.c.h.b16 %v385
        %v426 = vpack.c.b16 %v418, %v414
        %v427 = vpack.c.b16 %v419, %v415
        %v428 = vpack.c.b16 %v420, %v416
        %v429 = vpack.c.b16 %v421, %v417
        %v430 = vpack.c.b16 %v422, %v422
        %v431 = vpack.c.b16 %v423, %v423
        %v432 = vpack.c.b16 %v424, %v424
        %v433 = vpack.c.b16 %v425, %v425
        %vm438 = vcmask 195584
        %v440 = vsel %vm438, %v379, 0
        %vm442 = vcmask 1043456
        %v444 = vsel %vm442, %v430, 0
        %v447 = vsel %vm442, %v431, 0
        %v450 = vsel %vm442, %v432, 0
        %v453 = vsel %vm442, %v433, 0
        %455 = vmatprep.subr.bf16.mxu0 0
        %456 = vmatpush1.bf16.msra.mxu0 0
        %457 = vmatprep.subr.bf16.mxu0 0
        %458 = vmatpush1.bf16.msra.mxu0 0
        %459 = vmatprep.subr.bf16.mxu0 0
        %460 = vmatpush1.bf16.msra.mxu0 0
        %461 = vmatprep.subr.bf16.mxu0 0
        %462 = vmatpush1.bf16.msra.mxu0 0
        %463 = vmatprep.subr.bf16.mxu0 0
        %464 = vmatpush1.bf16.msra.mxu0 0
        %465 = vmatprep.subr.bf16.mxu0 0
        %466 = vmatpush1.bf16.msra.mxu0 0
        %467 = vmatprep.subr.bf16.mxu0 %v447
        %468 = vmatpush1.bf16.msra.mxu0 %v444
        %469 = vmatprep.subr.bf16.mxu0 %v427
        %470 = vmatpush1.bf16.msra.mxu0 %v426
        %471 = vmatprep.subr.bf16.mxu0 0
        %472 = vmatpush2.bf16.msra.mxu0 0
        %473 = vmatprep.subr.bf16.mxu0 0
        %474 = vmatpush2.bf16.msra.mxu0 0
        %475 = vmatprep.subr.bf16.mxu0 0
        %476 = vmatpush2.bf16.msra.mxu0 0
        %477 = vmatprep.subr.bf16.mxu0 0
        %478 = vmatpush2.bf16.msra.mxu0 0
        %479 = vmatprep.subr.bf16.mxu0 0
        %480 = vmatpush2.bf16.msra.mxu0 0
        %481 = vmatprep.subr.bf16.mxu0 0
        %482 = vmatpush2.bf16.msra.mxu0 0
        %483 = vmatprep.subr.bf16.mxu0 0
        %484 = vmatpush2.bf16.msra.mxu0 0
        %485 = vmatprep.subr.bf16.mxu0 0
        %486 = vmatpush2.bf16.msra.mxu0 0
        %487 = vmatprep.mubr.bf16.mxu0 0
        %488 = vmatmul.mubr.bf16.gmra.mxu0 %v440
        %v489 = vpop.f32.mrf.mxu0
        %v490 = vadd.f32 %v391, %v489
        %v491 = vpop.f32.mrf.mxu0
        %v492 = vadd.f32 %v395, %v491
        %v493 = vpop.f32.mrf.mxu0
        %v494 = vpop.f32.mrf.mxu0
        %495 = vdwg.mxu0
        %496 = vmatprep.subr.bf16.mxu0 0
        %497 = vmatpush1.bf16.msra.mxu0 0
        %498 = vmatprep.subr.bf16.mxu0 0
        %499 = vmatpush1.bf16.msra.mxu0 0
        %500 = vmatprep.subr.bf16.mxu0 0
        %501 = vmatpush1.bf16.msra.mxu0 0
        %502 = vmatprep.subr.bf16.mxu0 0
        %503 = vmatpush1.bf16.msra.mxu0 0
        %504 = vmatprep.subr.bf16.mxu0 0
        %505 = vmatpush1.bf16.msra.mxu0 0
        %506 = vmatprep.subr.bf16.mxu0 0
        %507 = vmatpush1.bf16.msra.mxu0 0
        %508 = vmatprep.subr.bf16.mxu0 %v453
        %509 = vmatpush1.bf16.msra.mxu0 %v450
        %510 = vmatprep.subr.bf16.mxu0 %v429
        %511 = vmatpush1.bf16.msra.mxu0 %v428
        %512 = vmatprep.subr.bf16.mxu0 0
        %513 = vmatpush2.bf16.msra.mxu0 0
        %514 = vmatprep.subr.bf16.mxu0 0
        %515 = vmatpush2.bf16.msra.mxu0 0
        %516 = vmatprep.subr.bf16.mxu0 0
        %517 = vmatpush2.bf16.msra.mxu0 0
        %518 = vmatprep.subr.bf16.mxu0 0
        %519 = vmatpush2.bf16.msra.mxu0 0
        %520 = vmatprep.subr.bf16.mxu0 0
        %521 = vmatpush2.bf16.msra.mxu0 0
        %522 = vmatprep.subr.bf16.mxu0 0
        %523 = vmatpush2.bf16.msra.mxu0 0
        %524 = vmatprep.subr.bf16.mxu0 0
        %525 = vmatpush2.bf16.msra.mxu0 0
        %526 = vmatprep.subr.bf16.mxu0 0
        %527 = vmatpush2.bf16.msra.mxu0 0
        %528 = vmatprep.mubr.bf16.mxu0 0
        %529 = vmatmul.mubr.bf16.gmra.mxu0 %v440
        %v530 = vpop.f32.mrf.mxu0
        %v531 = vadd.f32 %v399, %v530
        %v532 = vpop.f32.mrf.mxu0
        %v533 = vadd.f32 %v403, %v532
        %v534 = vpop.f32.mrf.mxu0
        %v535 = vpop.f32.mrf.mxu0
        %536 = vdwg.mxu0
        %v537 = vmax.f32 %v490, 0.0
        %v538 = vmax.f32 %v492, 0.0
        %v539 = vmax.f32 %v531, 0.0
        %v540 = vmax.f32 %v533, 0.0
        %v541 = vpack.c.bf16 %v537, %v537
        %v542 = vpack.c.bf16 %v538, %v538
        %v543 = vpack.c.bf16 %v539, %v539
        %v544 = vpack.c.bf16 %v540, %v540
        %v545 = vld [vmem:[#allocation4] sm:$0xff]
        %v546 = vld [vmem:[#allocation4 + $0x8] sm:$0xff]
        %v547 = vld [vmem:[#allocation4 + $0x10] sm:$0xff]
        %v548 = vld [vmem:[#allocation4 + $0x18] sm:$0xff]
        %v549 = vld [vmem:[#allocation4 + $0x20] sm:$0xff]
        %v550 = vld [vmem:[#allocation4 + $0x28] sm:$0xff]
        %v551 = vld [vmem:[#allocation4 + $0x30] sm:$0xff]
        %v552 = vld [vmem:[#allocation4 + $0x38] sm:$0xff]
        %v553 = vld [vmem:[#allocation4 + $0x40] sm:$0xff]
        %v554 = vld [vmem:[#allocation4 + $0x48] sm:$0xff]
        %v555 = vld [vmem:[#allocation4 + $0x50] sm:$0xff]
        %v556 = vld [vmem:[#allocation4 + $0x58] sm:$0xff]
        %v557 = vld [vmem:[#allocation4 + $0x60] sm:$0xff]
        %v558 = vld [vmem:[#allocation4 + $0x68] sm:$0xff]
        %v559 = vld [vmem:[#allocation4 + $0x70] sm:$0xff]
        %v560 = vld [vmem:[#allocation4 + $0x78] sm:$0xff]
        %v561 = vld [vmem:[#allocation4 + $0x80] sm:$0xff]
        %v562 = vld [vmem:[#allocation4 + $0x88] sm:$0xff]
        %v563 = vld [vmem:[#allocation4 + $0x90] sm:$0xff]
        %v564 = vld [vmem:[#allocation4 + $0x98] sm:$0xff]
        %v565 = vld [vmem:[#allocation4 + $0xa0] sm:$0xff]
        %v566 = vld [vmem:[#allocation4 + $0xa8] sm:$0xff]
        %v567 = vld [vmem:[#allocation4 + $0xb0] sm:$0xff]
        %v568 = vld [vmem:[#allocation4 + $0xb8] sm:$0xff]
        %v569 = vld [vmem:[#allocation4 + $0xc0] sm:$0xff]
        %v570 = vld [vmem:[#allocation4 + $0xc8] sm:$0xff]
        %v571 = vld [vmem:[#allocation4 + $0xd0] sm:$0xff]
        %v572 = vld [vmem:[#allocation4 + $0xd8] sm:$0xff]
        %v573 = vld [vmem:[#allocation4 + $0xe0] sm:$0xff]
        %v574 = vld [vmem:[#allocation4 + $0xe8] sm:$0xff]
        %v575 = vld [vmem:[#allocation4 + $0xf0] sm:$0xff]
        %v576 = vld [vmem:[#allocation4 + $0xf8] sm:$0xff]
        %v577 = vld [vmem:[#allocation4 + $0x100] sm:$0xff]
        %v578 = vld [vmem:[#allocation4 + $0x108] sm:$0xff]
        %v579 = vld [vmem:[#allocation4 + $0x110] sm:$0xff]
        %v580 = vld [vmem:[#allocation4 + $0x118] sm:$0xff]
        %v581 = vld [vmem:[#allocation4 + $0x120] sm:$0xff]
        %v582 = vld [vmem:[#allocation4 + $0x128] sm:$0xff]
        %v583 = vld [vmem:[#allocation4 + $0x130] sm:$0xff]
        %v584 = vld [vmem:[#allocation4 + $0x138] sm:$0xff]
        %v585 = vld [vmem:[#allocation4 + $0x140] sm:$0xff]
        %v586 = vld [vmem:[#allocation4 + $0x148] sm:$0xff]
        %v587 = vld [vmem:[#allocation4 + $0x150] sm:$0xff]
        %v588 = vld [vmem:[#allocation4 + $0x158] sm:$0xff]
        %v589 = vld [vmem:[#allocation4 + $0x160] sm:$0xff]
        %v590 = vld [vmem:[#allocation4 + $0x168] sm:$0xff]
        %v591 = vld [vmem:[#allocation4 + $0x170] sm:$0xff]
        %v592 = vld [vmem:[#allocation4 + $0x178] sm:$0xff]
        %v593 = vld [vmem:[#allocation4 + $0x180] sm:$0xff]
        %v594 = vld [vmem:[#allocation4 + $0x188] sm:$0xff]
        %v595 = vld [vmem:[#allocation4 + $0x190] sm:$0xff]
        %v596 = vld [vmem:[#allocation4 + $0x198] sm:$0xff]
        %v597 = vld [vmem:[#allocation4 + $0x1a0] sm:$0xff]
        %v598 = vld [vmem:[#allocation4 + $0x1a8] sm:$0xff]
        %v599 = vld [vmem:[#allocation4 + $0x1b0] sm:$0xff]
        %v600 = vld [vmem:[#allocation4 + $0x1b8] sm:$0xff]
        %v601 = vld [vmem:[#allocation4 + $0x1c0] sm:$0xff]
        %v602 = vld [vmem:[#allocation4 + $0x1c8] sm:$0xff]
        %v603 = vld [vmem:[#allocation4 + $0x1d0] sm:$0xff]
        %v604 = vld [vmem:[#allocation4 + $0x1d8] sm:$0xff]
        %v605 = vld [vmem:[#allocation4 + $0x1e0] sm:$0xff]
        %v606 = vld [vmem:[#allocation4 + $0x1e8] sm:$0xff]
        %v607 = vld [vmem:[#allocation4 + $0x1f0] sm:$0xff]
        %v608 = vld [vmem:[#allocation4 + $0x1f8] sm:$0xff]
        %v609 = vld [vmem:[%s4] sm:$0x3]
        %v611 = vlaneseq
        %v612 = vshrl.u32 %v611, 7
        %v613 = vsub.s32 0, %v612
        %v614 = vrot.slane %v609, %v613
        %v615 = vlaneseq
        %v616 = vshrl.u32 %v615, 7
        %v617 = vsub.s32 1, %v616
        %v618 = vrot.slane %v609, %v617
        %v685 = vunpack.c.l.b16 %v545
        %v686 = vunpack.c.h.b16 %v545
        %v687 = vunpack.c.l.b16 %v546
        %v688 = vunpack.c.h.b16 %v546
        %v689 = vunpack.c.l.b16 %v547
        %v690 = vunpack.c.h.b16 %v547
        %v691 = vunpack.c.l.b16 %v548
        %v692 = vunpack.c.h.b16 %v548
        %v693 = vunpack.c.l.b16 %v549
        %v694 = vunpack.c.h.b16 %v549
        %v695 = vunpack.c.l.b16 %v550
        %v696 = vunpack.c.h.b16 %v550
        %v697 = vunpack.c.l.b16 %v551
        %v698 = vunpack.c.h.b16 %v551
        %v699 = vunpack.c.l.b16 %v552
        %v700 = vunpack.c.h.b16 %v552
        %v701 = vunpack.c.l.b16 %v553
        %v702 = vunpack.c.h.b16 %v553
        %v703 = vunpack.c.l.b16 %v554
        %v704 = vunpack.c.h.b16 %v554
        %v705 = vunpack.c.l.b16 %v555
        %v706 = vunpack.c.h.b16 %v555
        %v707 = vunpack.c.l.b16 %v556
        %v708 = vunpack.c.h.b16 %v556
        %v709 = vunpack.c.l.b16 %v557
        %v710 = vunpack.c.h.b16 %v557
        %v711 = vunpack.c.l.b16 %v558
        %v712 = vunpack.c.h.b16 %v558
        %v713 = vunpack.c.l.b16 %v559
        %v714 = vunpack.c.h.b16 %v559
        %v715 = vunpack.c.l.b16 %v560
        %v716 = vunpack.c.h.b16 %v560
        %v717 = vunpack.c.l.b16 %v561
        %v718 = vunpack.c.h.b16 %v561
        %v719 = vunpack.c.l.b16 %v562
        %v720 = vunpack.c.h.b16 %v562
        %v721 = vunpack.c.l.b16 %v563
        %v722 = vunpack.c.h.b16 %v563
        %v723 = vunpack.c.l.b16 %v564
        %v724 = vunpack.c.h.b16 %v564
        %v725 = vunpack.c.l.b16 %v565
        %v726 = vunpack.c.h.b16 %v565
        %v727 = vunpack.c.l.b16 %v566
        %v728 = vunpack.c.h.b16 %v566
        %v729 = vunpack.c.l.b16 %v567
        %v730 = vunpack.c.h.b16 %v567
        %v731 = vunpack.c.l.b16 %v568
        %v732 = vunpack.c.h.b16 %v568
        %v733 = vunpack.c.l.b16 %v569
        %v734 = vunpack.c.h.b16 %v569
        %v735 = vunpack.c.l.b16 %v570
        %v736 = vunpack.c.h.b16 %v570
        %v737 = vunpack.c.l.b16 %v571
        %v738 = vunpack.c.h.b16 %v571
        %v739 = vunpack.c.l.b16 %v572
        %v740 = vunpack.c.h.b16 %v572
        %v741 = vunpack.c.l.b16 %v573
        %v742 = vunpack.c.h.b16 %v573
        %v743 = vunpack.c.l.b16 %v574
        %v744 = vunpack.c.h.b16 %v574
        %v745 = vunpack.c.l.b16 %v575
        %v746 = vunpack.c.h.b16 %v575
        %v747 = vunpack.c.l.b16 %v576
        %v748 = vunpack.c.h.b16 %v576
        %v749 = vunpack.c.l.b16 %v577
        %v750 = vunpack.c.h.b16 %v577
        %v751 = vunpack.c.l.b16 %v578
        %v752 = vunpack.c.h.b16 %v578
        %v753 = vunpack.c.l.b16 %v579
        %v754 = vunpack.c.h.b16 %v579
        %v755 = vunpack.c.l.b16 %v580
        %v756 = vunpack.c.h.b16 %v580
        %v757 = vunpack.c.l.b16 %v581
        %v758 = vunpack.c.h.b16 %v581
        %v759 = vunpack.c.l.b16 %v582
        %v760 = vunpack.c.h.b16 %v582
        %v761 = vunpack.c.l.b16 %v583
        %v762 = vunpack.c.h.b16 %v583
        %v763 = vunpack.c.l.b16 %v584
        %v764 = vunpack.c.h.b16 %v584
        %v765 = vunpack.c.l.b16 %v585
        %v766 = vunpack.c.h.b16 %v585
        %v767 = vunpack.c.l.b16 %v586
        %v768 = vunpack.c.h.b16 %v586
        %v769 = vunpack.c.l.b16 %v587
        %v770 = vunpack.c.h.b16 %v587
        %v771 = vunpack.c.l.b16 %v588
        %v772 = vunpack.c.h.b16 %v588
        %v773 = vunpack.c.l.b16 %v589
        %v774 = vunpack.c.h.b16 %v589
        %v775 = vunpack.c.l.b16 %v590
        %v776 = vunpack.c.h.b16 %v590
        %v777 = vunpack.c.l.b16 %v591
        %v778 = vunpack.c.h.b16 %v591
        %v779 = vunpack.c.l.b16 %v592
        %v780 = vunpack.c.h.b16 %v592
        %v781 = vunpack.c.l.b16 %v593
        %v782 = vunpack.c.h.b16 %v593
        %v783 = vunpack.c.l.b16 %v594
        %v784 = vunpack.c.h.b16 %v594
        %v785 = vunpack.c.l.b16 %v595
        %v786 = vunpack.c.h.b16 %v595
        %v787 = vunpack.c.l.b16 %v596
        %v788 = vunpack.c.h.b16 %v596
        %v789 = vunpack.c.l.b16 %v597
        %v790 = vunpack.c.h.b16 %v597
        %v791 = vunpack.c.l.b16 %v598
        %v792 = vunpack.c.h.b16 %v598
        %v793 = vunpack.c.l.b16 %v599
        %v794 = vunpack.c.h.b16 %v599
        %v795 = vunpack.c.l.b16 %v600
        %v796 = vunpack.c.h.b16 %v600
        %v797 = vunpack.c.l.b16 %v601
        %v798 = vunpack.c.h.b16 %v601
        %v799 = vunpack.c.l.b16 %v602
        %v800 = vunpack.c.h.b16 %v602
        %v801 = vunpack.c.l.b16 %v603
        %v802 = vunpack.c.h.b16 %v603
        %v803 = vunpack.c.l.b16 %v604
        %v804 = vunpack.c.h.b16 %v604
        %v805 = vunpack.c.l.b16 %v605
        %v806 = vunpack.c.h.b16 %v605
        %v807 = vunpack.c.l.b16 %v606
        %v808 = vunpack.c.h.b16 %v606
        %v809 = vunpack.c.l.b16 %v607
        %v810 = vunpack.c.h.b16 %v607
        %v811 = vunpack.c.l.b16 %v608
        %v812 = vunpack.c.h.b16 %v608
        %v813 = vpack.c.b16 %v687, %v685
        %v814 = vpack.c.b16 %v688, %v686
        %v815 = vpack.c.b16 %v691, %v689
        %v816 = vpack.c.b16 %v692, %v690
        %v817 = vpack.c.b16 %v695, %v693
        %v818 = vpack.c.b16 %v696, %v694
        %v819 = vpack.c.b16 %v699, %v697
        %v820 = vpack.c.b16 %v700, %v698
        %v821 = vpack.c.b16 %v703, %v701
        %v822 = vpack.c.b16 %v704, %v702
        %v823 = vpack.c.b16 %v707, %v705
        %v824 = vpack.c.b16 %v708, %v706
        %v825 = vpack.c.b16 %v711, %v709
        %v826 = vpack.c.b16 %v712, %v710
        %v827 = vpack.c.b16 %v715, %v713
        %v828 = vpack.c.b16 %v716, %v714
        %v829 = vpack.c.b16 %v719, %v717
        %v830 = vpack.c.b16 %v720, %v718
        %v831 = vpack.c.b16 %v723, %v721
        %v832 = vpack.c.b16 %v724, %v722
        %v833 = vpack.c.b16 %v727, %v725
        %v834 = vpack.c.b16 %v728, %v726
        %v835 = vpack.c.b16 %v731, %v729
        %v836 = vpack.c.b16 %v732, %v730
        %v837 = vpack.c.b16 %v735, %v733
        %v838 = vpack.c.b16 %v736, %v734
        %v839 = vpack.c.b16 %v739, %v737
        %v840 = vpack.c.b16 %v740, %v738
        %v841 = vpack.c.b16 %v743, %v741
        %v842 = vpack.c.b16 %v744, %v742
        %v843 = vpack.c.b16 %v747, %v745
        %v844 = vpack.c.b16 %v748, %v746
        %v845 = vpack.c.b16 %v751, %v749
        %v846 = vpack.c.b16 %v752, %v750
        %v847 = vpack.c.b16 %v755, %v753
        %v848 = vpack.c.b16 %v756, %v754
        %v849 = vpack.c.b16 %v759, %v757
        %v850 = vpack.c.b16 %v760, %v758
        %v851 = vpack.c.b16 %v763, %v761
        %v852 = vpack.c.b16 %v764, %v762
        %v853 = vpack.c.b16 %v767, %v765
        %v854 = vpack.c.b16 %v768, %v766
        %v855 = vpack.c.b16 %v771, %v769
        %v856 = vpack.c.b16 %v772, %v770
        %v857 = vpack.c.b16 %v775, %v773
        %v858 = vpack.c.b16 %v776, %v774
        %v859 = vpack.c.b16 %v779, %v777
        %v860 = vpack.c.b16 %v780, %v778
        %v861 = vpack.c.b16 %v783, %v781
        %v862 = vpack.c.b16 %v784, %v782
        %v863 = vpack.c.b16 %v787, %v785
        %v864 = vpack.c.b16 %v788, %v786
        %v865 = vpack.c.b16 %v791, %v789
        %v866 = vpack.c.b16 %v792, %v790
        %v867 = vpack.c.b16 %v795, %v793
        %v868 = vpack.c.b16 %v796, %v794
        %v869 = vpack.c.b16 %v799, %v797
        %v870 = vpack.c.b16 %v800, %v798
        %v871 = vpack.c.b16 %v803, %v801
        %v872 = vpack.c.b16 %v804, %v802
        %v873 = vpack.c.b16 %v807, %v805
        %v874 = vpack.c.b16 %v808, %v806
        %v875 = vpack.c.b16 %v811, %v809
        %v876 = vpack.c.b16 %v812, %v810
        %941 = vmatprep.subr.bf16.mxu0 %v828
        %942 = vmatpush1.bf16.msra.mxu0 %v827
        %943 = vmatprep.subr.bf16.mxu0 %v826
        %944 = vmatpush1.bf16.msra.mxu0 %v825
        %945 = vmatprep.subr.bf16.mxu0 %v824
        %946 = vmatpush1.bf16.msra.mxu0 %v823
        %947 = vmatprep.subr.bf16.mxu0 %v822
        %948 = vmatpush1.bf16.msra.mxu0 %v821
        %949 = vmatprep.subr.bf16.mxu0 %v820
        %950 = vmatpush1.bf16.msra.mxu0 %v819
        %951 = vmatprep.subr.bf16.mxu0 %v818
        %952 = vmatpush1.bf16.msra.mxu0 %v817
        %953 = vmatprep.subr.bf16.mxu0 %v816
        %954 = vmatpush1.bf16.msra.mxu0 %v815
        %955 = vmatprep.subr.bf16.mxu0 %v814
        %956 = vmatpush1.bf16.msra.mxu0 %v813
        %957 = vmatprep.subr.bf16.mxu0 %v844
        %958 = vmatpush2.bf16.msra.mxu0 %v843
        %959 = vmatprep.subr.bf16.mxu0 %v842
        %960 = vmatpush2.bf16.msra.mxu0 %v841
        %961 = vmatprep.subr.bf16.mxu0 %v840
        %962 = vmatpush2.bf16.msra.mxu0 %v839
        %963 = vmatprep.subr.bf16.mxu0 %v838
        %964 = vmatpush2.bf16.msra.mxu0 %v837
        %965 = vmatprep.subr.bf16.mxu0 %v836
        %966 = vmatpush2.bf16.msra.mxu0 %v835
        %967 = vmatprep.subr.bf16.mxu0 %v834
        %968 = vmatpush2.bf16.msra.mxu0 %v833
        %969 = vmatprep.subr.bf16.mxu0 %v832
        %970 = vmatpush2.bf16.msra.mxu0 %v831
        %971 = vmatprep.subr.bf16.mxu0 %v830
        %972 = vmatpush2.bf16.msra.mxu0 %v829
        %973 = vmatprep.mubr.bf16.mxu0 %v542
        %974 = vmatmul.mubr.bf16.gmra.mxu0 %v541
        %v975 = vpop.f32.mrf.mxu0
        %v976 = vadd.f32 %v614, %v975
        %v977 = vpop.f32.mrf.mxu0
        %v978 = vadd.f32 %v618, %v977
        %v979 = vpop.f32.mrf.mxu0
        %v980 = vpop.f32.mrf.mxu0
        %981 = vdwg.mxu0
        %982 = vmatprep.subr.bf16.mxu0 %v860
        %983 = vmatpush1.bf16.msra.mxu0 %v859
        %984 = vmatprep.subr.bf16.mxu0 %v858
        %985 = vmatpush1.bf16.msra.mxu0 %v857
        %986 = vmatprep.subr.bf16.mxu0 %v856
        %987 = vmatpush1.bf16.msra.mxu0 %v855
        %988 = vmatprep.subr.bf16.mxu0 %v854
        %989 = vmatpush1.bf16.msra.mxu0 %v853
        %990 = vmatprep.subr.bf16.mxu0 %v852
        %991 = vmatpush1.bf16.msra.mxu0 %v851
        %992 = vmatprep.subr.bf16.mxu0 %v850
        %993 = vmatpush1.bf16.msra.mxu0 %v849
        %994 = vmatprep.subr.bf16.mxu0 %v848
        %995 = vmatpush1.bf16.msra.mxu0 %v847
        %996 = vmatprep.subr.bf16.mxu0 %v846
        %997 = vmatpush1.bf16.msra.mxu0 %v845
        %998 = vmatprep.subr.bf16.mxu0 %v876
        %999 = vmatpush2.bf16.msra.mxu0 %v875
        %1000 = vmatprep.subr.bf16.mxu0 %v874
        %1001 = vmatpush2.bf16.msra.mxu0 %v873
        %1002 = vmatprep.subr.bf16.mxu0 %v872
        %1003 = vmatpush2.bf16.msra.mxu0 %v871
        %1004 = vmatprep.subr.bf16.mxu0 %v870
        %1005 = vmatpush2.bf16.msra.mxu0 %v869
        %1006 = vmatprep.subr.bf16.mxu0 %v868
        %1007 = vmatpush2.bf16.msra.mxu0 %v867
        %1008 = vmatprep.subr.bf16.mxu0 %v866
        %1009 = vmatpush2.bf16.msra.mxu0 %v865
        %1010 = vmatprep.subr.bf16.mxu0 %v864
        %1011 = vmatpush2.bf16.msra.mxu0 %v863
        %1012 = vmatprep.subr.bf16.mxu0 %v862
        %1013 = vmatpush2.bf16.msra.mxu0 %v861
        %1014 = vmatprep.mubr.bf16.mxu0 %v544
        %1015 = vmatmul.mubr.bf16.gmra.mxu0 %v543
        %v1016 = vpop.f32.mrf.mxu0
        %v1017 = vadd.f32 %v976, %v1016
        %v1018 = vpop.f32.mrf.mxu0
        %v1019 = vadd.f32 %v978, %v1018
        %v1020 = vpop.f32.mrf.mxu0
        %v1021 = vpop.f32.mrf.mxu0
        %1022 = vdwg.mxu0
        %v1023 = vmax.f32 %v1017, 0.0
        %v1024 = vmax.f32 %v1019, 0.0
        %v1025 = vpack.c.bf16 %v1023, %v1023
        %v1026 = vpack.c.bf16 %v1024, %v1024
        %v1027 = vld [vmem:[#allocation6] sm:$0xf]
        %v1028 = vld [vmem:[#allocation6 + $0x4] sm:$0xf]
        %v1029 = vld [vmem:[#allocation6 + $0x8] sm:$0xf]
        %v1030 = vld [vmem:[#allocation6 + $0xc] sm:$0xf]
        %v1031 = vld [vmem:[#allocation6 + $0x10] sm:$0xf]
        %v1032 = vld [vmem:[#allocation6 + $0x14] sm:$0xf]
        %v1033 = vld [vmem:[#allocation6 + $0x18] sm:$0xf]
        %v1034 = vld [vmem:[#allocation6 + $0x1c] sm:$0xf]
        %v1035 = vld [vmem:[#allocation6 + $0x20] sm:$0xf]
        %v1036 = vld [vmem:[#allocation6 + $0x24] sm:$0xf]
        %v1037 = vld [vmem:[#allocation6 + $0x28] sm:$0xf]
        %v1038 = vld [vmem:[#allocation6 + $0x2c] sm:$0xf]
        %v1039 = vld [vmem:[#allocation6 + $0x30] sm:$0xf]
        %v1040 = vld [vmem:[#allocation6 + $0x34] sm:$0xf]
        %v1041 = vld [vmem:[#allocation6 + $0x38] sm:$0xf]
        %v1042 = vld [vmem:[#allocation6 + $0x3c] sm:$0xf]
        %v1043 = vld [vmem:[#allocation6 + $0x40] sm:$0xf]
        %v1044 = vld [vmem:[#allocation6 + $0x44] sm:$0xf]
        %v1045 = vld [vmem:[#allocation6 + $0x48] sm:$0xf]
        %v1046 = vld [vmem:[#allocation6 + $0x4c] sm:$0xf]
        %v1047 = vld [vmem:[#allocation6 + $0x50] sm:$0xf]
        %v1048 = vld [vmem:[#allocation6 + $0x54] sm:$0xf]
        %v1049 = vld [vmem:[#allocation6 + $0x58] sm:$0xf]
        %v1050 = vld [vmem:[#allocation6 + $0x5c] sm:$0xf]
        %v1051 = vld [vmem:[#allocation6 + $0x60] sm:$0xf]
        %v1052 = vld [vmem:[#allocation6 + $0x64] sm:$0xf]
        %v1053 = vld [vmem:[#allocation6 + $0x68] sm:$0xf]
        %v1054 = vld [vmem:[#allocation6 + $0x6c] sm:$0xf]
        %v1055 = vld [vmem:[#allocation6 + $0x70] sm:$0xf]
        %v1056 = vld [vmem:[#allocation6 + $0x74] sm:$0xf]
        %v1057 = vld [vmem:[#allocation6 + $0x78] sm:$0xf]
        %v1058 = vld [vmem:[#allocation6 + $0x7c] sm:$0xf]
        %v1059 = vld [vmem:[%s6] sm:$0x1]
        %v1061 = vlaneseq
        %v1062 = vshrl.u32 %v1061, 7
        %v1063 = vsub.s32 0, %v1062
        %v1064 = vrot.slane %v1059, %v1063
        %v1098 = vunpack.c.l.b16 %v1027
        %v1099 = vunpack.c.l.b16 %v1028
        %v1100 = vunpack.c.l.b16 %v1029
        %v1101 = vunpack.c.l.b16 %v1030
        %v1102 = vunpack.c.l.b16 %v1031
        %v1103 = vunpack.c.l.b16 %v1032
        %v1104 = vunpack.c.l.b16 %v1033
        %v1105 = vunpack.c.l.b16 %v1034
        %v1106 = vunpack.c.l.b16 %v1035
        %v1107 = vunpack.c.l.b16 %v1036
        %v1108 = vunpack.c.l.b16 %v1037
        %v1109 = vunpack.c.l.b16 %v1038
        %v1110 = vunpack.c.l.b16 %v1039
        %v1111 = vunpack.c.l.b16 %v1040
        %v1112 = vunpack.c.l.b16 %v1041
        %v1113 = vunpack.c.l.b16 %v1042
        %v1114 = vunpack.c.l.b16 %v1043
        %v1115 = vunpack.c.l.b16 %v1044
        %v1116 = vunpack.c.l.b16 %v1045
        %v1117 = vunpack.c.l.b16 %v1046
        %v1118 = vunpack.c.l.b16 %v1047
        %v1119 = vunpack.c.l.b16 %v1048
        %v1120 = vunpack.c.l.b16 %v1049
        %v1121 = vunpack.c.l.b16 %v1050
        %v1122 = vunpack.c.l.b16 %v1051
        %v1123 = vunpack.c.l.b16 %v1052
        %v1124 = vunpack.c.l.b16 %v1053
        %v1125 = vunpack.c.l.b16 %v1054
        %v1126 = vunpack.c.l.b16 %v1055
        %v1127 = vunpack.c.l.b16 %v1056
        %v1128 = vunpack.c.l.b16 %v1057
        %v1129 = vunpack.c.l.b16 %v1058
        %v1130 = vpack.c.b16 %v1099, %v1098
        %v1131 = vpack.c.b16 %v1101, %v1100
        %v1132 = vpack.c.b16 %v1103, %v1102
        %v1133 = vpack.c.b16 %v1105, %v1104
        %v1134 = vpack.c.b16 %v1107, %v1106
        %v1135 = vpack.c.b16 %v1109, %v1108
        %v1136 = vpack.c.b16 %v1111, %v1110
        %v1137 = vpack.c.b16 %v1113, %v1112
        %v1138 = vpack.c.b16 %v1115, %v1114
        %v1139 = vpack.c.b16 %v1117, %v1116
        %v1140 = vpack.c.b16 %v1119, %v1118
        %v1141 = vpack.c.b16 %v1121, %v1120
        %v1142 = vpack.c.b16 %v1123, %v1122
        %v1143 = vpack.c.b16 %v1125, %v1124
        %v1144 = vpack.c.b16 %v1127, %v1126
        %v1145 = vpack.c.b16 %v1129, %v1128
        %1162 = vmatprep.subr.bf16.mxu0 0
        %1163 = vmatpush1.bf16.msra.mxu0 %v1137
        %1164 = vmatprep.subr.bf16.mxu0 0
        %1165 = vmatpush1.bf16.msra.mxu0 %v1136
        %1166 = vmatprep.subr.bf16.mxu0 0
        %1167 = vmatpush1.bf16.msra.mxu0 %v1135
        %1168 = vmatprep.subr.bf16.mxu0 0
        %1169 = vmatpush1.bf16.msra.mxu0 %v1134
        %1170 = vmatprep.subr.bf16.mxu0 0
        %1171 = vmatpush1.bf16.msra.mxu0 %v1133
        %1172 = vmatprep.subr.bf16.mxu0 0
        %1173 = vmatpush1.bf16.msra.mxu0 %v1132
        %1174 = vmatprep.subr.bf16.mxu0 0
        %1175 = vmatpush1.bf16.msra.mxu0 %v1131
        %1176 = vmatprep.subr.bf16.mxu0 0
        %1177 = vmatpush1.bf16.msra.mxu0 %v1130
        %1178 = vmatprep.subr.bf16.mxu0 0
        %1179 = vmatpush2.bf16.msra.mxu0 %v1145
        %1180 = vmatprep.subr.bf16.mxu0 0
        %1181 = vmatpush2.bf16.msra.mxu0 %v1144
        %1182 = vmatprep.subr.bf16.mxu0 0
        %1183 = vmatpush2.bf16.msra.mxu0 %v1143
        %1184 = vmatprep.subr.bf16.mxu0 0
        %1185 = vmatpush2.bf16.msra.mxu0 %v1142
        %1186 = vmatprep.subr.bf16.mxu0 0
        %1187 = vmatpush2.bf16.msra.mxu0 %v1141
        %1188 = vmatprep.subr.bf16.mxu0 0
        %1189 = vmatpush2.bf16.msra.mxu0 %v1140
        %1190 = vmatprep.subr.bf16.mxu0 0
        %1191 = vmatpush2.bf16.msra.mxu0 %v1139
        %1192 = vmatprep.subr.bf16.mxu0 0
        %1193 = vmatpush2.bf16.msra.mxu0 %v1138
        %1194 = vmatprep.mubr.bf16.mxu0 %v1026
        %1195 = vmatmul.mubr.bf16.gmra.mxu0 %v1025
        %v1196 = vpop.f32.mrf.mxu0
        %v1197 = vadd.f32 %v1064, %v1196
        %v1198 = vpop.f32.mrf.mxu0
        %v1199 = vpop.f32.mrf.mxu0
        %v1200 = vpop.f32.mrf.mxu0
        %1201 = vdwg.mxu0
        %v1202 = vtanh.pop %v1197
        %v1203 = vpack.c.bf16 %v1202, %v1202
        %v1204 = vld [vmem:[%s7] sm:$0xf]
        %v1205 = vld [vmem:[%s7 + $0x4] sm:$0xf]
        %v1206 = vld [vmem:[%s7 + $0x8] sm:$0xf]
        %v1207 = vld [vmem:[%s7 + $0xc] sm:$0xf]
        %v1208 = vld [vmem:[%s7 + $0x10] sm:$0xf]
        %v1209 = vld [vmem:[%s7 + $0x14] sm:$0xf]
        %v1210 = vld [vmem:[%s7 + $0x18] sm:$0xf]
        %v1211 = vld [vmem:[%s7 + $0x1c] sm:$0xf]
        %v1212 = vld [vmem:[%s7 + $0x20] sm:$0xf]
        %v1213 = vld [vmem:[%s7 + $0x24] sm:$0xf]
        %v1214 = vld [vmem:[%s7 + $0x28] sm:$0xf]
        %v1215 = vld [vmem:[%s7 + $0x2c] sm:$0xf]
        %v1216 = vld [vmem:[%s7 + $0x30] sm:$0xf]
        %v1217 = vld [vmem:[%s7 + $0x34] sm:$0xf]
        %v1218 = vld [vmem:[%s7 + $0x38] sm:$0xf]
        %v1219 = vld [vmem:[%s7 + $0x3c] sm:$0xf]
        %v1220 = vld [vmem:[%s8] sm:$0x1]
        %v1222 = vlaneseq
        %v1223 = vshrl.u32 %v1222, 7
        %v1224 = vsub.s32 0, %v1223
        %v1225 = vrot.slane %v1220, %v1224
        %v1243 = vunpack.c.l.b16 %v1204
        %v1244 = vunpack.c.l.b16 %v1205
        %v1245 = vunpack.c.l.b16 %v1206
        %v1246 = vunpack.c.l.b16 %v1207
        %v1247 = vunpack.c.l.b16 %v1208
        %v1248 = vunpack.c.l.b16 %v1209
        %v1249 = vunpack.c.l.b16 %v1210
        %v1250 = vunpack.c.l.b16 %v1211
        %v1251 = vunpack.c.l.b16 %v1212
        %v1252 = vunpack.c.l.b16 %v1213
        %v1253 = vunpack.c.l.b16 %v1214
        %v1254 = vunpack.c.l.b16 %v1215
        %v1255 = vunpack.c.l.b16 %v1216
        %v1256 = vunpack.c.l.b16 %v1217
        %v1257 = vunpack.c.l.b16 %v1218
        %v1258 = vunpack.c.l.b16 %v1219
        %v1259 = vpack.c.b16 %v1244, %v1243
        %v1260 = vpack.c.b16 %v1246, %v1245
        %v1261 = vpack.c.b16 %v1248, %v1247
        %v1262 = vpack.c.b16 %v1250, %v1249
        %v1263 = vpack.c.b16 %v1252, %v1251
        %v1264 = vpack.c.b16 %v1254, %v1253
        %v1265 = vpack.c.b16 %v1256, %v1255
        %v1266 = vpack.c.b16 %v1258, %v1257
        %1275 = vmatprep.subr.bf16.mxu0 0
        %1276 = vmatpush1.bf16.msra.mxu0 %v1266
        %1277 = vmatprep.subr.bf16.mxu0 0
        %1278 = vmatpush1.bf16.msra.mxu0 %v1265
        %1279 = vmatprep.subr.bf16.mxu0 0
        %1280 = vmatpush1.bf16.msra.mxu0 %v1264
        %1281 = vmatprep.subr.bf16.mxu0 0
        %1282 = vmatpush1.bf16.msra.mxu0 %v1263
        %1283 = vmatprep.subr.bf16.mxu0 0
        %1284 = vmatpush1.bf16.msra.mxu0 %v1262
        %1285 = vmatprep.subr.bf16.mxu0 0
        %1286 = vmatpush1.bf16.msra.mxu0 %v1261
        %1287 = vmatprep.subr.bf16.mxu0 0
        %1288 = vmatpush1.bf16.msra.mxu0 %v1260
        %1289 = vmatprep.subr.bf16.mxu0 0
        %1290 = vmatpush1.bf16.msra.mxu0 %v1259
        %1291 = vmatprep.subr.bf16.mxu0 0
        %1292 = vmatpush2.bf16.msra.mxu0 0
        %1293 = vmatprep.subr.bf16.mxu0 0
        %1294 = vmatpush2.bf16.msra.mxu0 0
        %1295 = vmatprep.subr.bf16.mxu0 0
        %1296 = vmatpush2.bf16.msra.mxu0 0
        %1297 = vmatprep.subr.bf16.mxu0 0
        %1298 = vmatpush2.bf16.msra.mxu0 0
        %1299 = vmatprep.subr.bf16.mxu0 0
        %1300 = vmatpush2.bf16.msra.mxu0 0
        %1301 = vmatprep.subr.bf16.mxu0 0
        %1302 = vmatpush2.bf16.msra.mxu0 0
        %1303 = vmatprep.subr.bf16.mxu0 0
        %1304 = vmatpush2.bf16.msra.mxu0 0
        %1305 = vmatprep.subr.bf16.mxu0 0
        %1306 = vmatpush2.bf16.msra.mxu0 0
        %1307 = vmatprep.mubr.bf16.mxu0 0
        %1308 = vmatmul.mubr.bf16.gmra.mxu0 %v1203
        %v1309 = vpop.f32.mrf.mxu0
        %v1310 = vadd.f32 %v1225, %v1309
        %v1311 = vpop.f32.mrf.mxu0
        %v1312 = vpop.f32.mrf.mxu0
        %v1313 = vpop.f32.mrf.mxu0
        %1314 = vdwg.mxu0
        %v1315 = vtanh.pop %v1310
        %vm1316 = vcmask 31744
        %1317 = vst.msk [vmem:[%s376] sm:$0xff] %vm1316, %v1315
        %p1318 = scmp.lt.s32.totalorder %s24, 2
        %s1319 = scalar_select %p1318, %s24, 2
        %s1320 = smul.addr %s1319, 8
        %s1321 = scalar_lea.vmem %s9, %s1320
        // Predicated region
        $region69: #{tpu_custom_call.1} parent=55 // pred_check
          %p1322 = pneg %p236
        $region70: #{tpu_custom_call.1} parent=55 // pred_check_branch
          %1324 = sbr.rel (%p1322) target = $region72
        $region71: #{tpu_custom_call.1} parent=55 // pred_region
          _
        $region72: #{tpu_custom_call.1} parent=55 // pred_fallthru
          _
      $region56: #{tpu_custom_call.1} parent=5 // pred_fallthru
        _
      %p1325 = scmp.le.s32.totalorder 2, %s19
      // Predicated region
      $region73: #{tpu_custom_call.1} parent=5 // pred_check
        %p1326 = pneg %p1325
      $region74: #{tpu_custom_call.1} parent=5 // pred_check_branch
        %1328 = sbr.rel (%p1326) target = $region76
      $region75: #{tpu_custom_call.1} parent=5 // pred_region
        %s1329 = ssub.s32 %s19, 2
        // Predicated region
        $region77: #{tpu_custom_call.1} parent=75 // pred_check
          %p1330 = pneg %p242
        $region78: #{tpu_custom_call.1} parent=75 // pred_check_branch
          %1332 = sbr.rel (%p1330) target = $region80
        $region79: #{tpu_custom_call.1} parent=75 // pred_region
          %p1333 = scmp.lt.s32.totalorder %s25, 2
          %s1334 = scalar_select %p1333, %s25, 2
          %s1335 = smul.addr %s1334, 8
          %s1336 = scalar_lea.vmem %s9, %s1335
        $region80: #{tpu_custom_call.1} parent=75 // pred_fallthru
          _
      $region76: #{tpu_custom_call.1} parent=5 // pred_fallthru
        _
    $region6: #{tpu_custom_call.1} parent=1 // loop_footer
      %s23 = sadd.s32 1, %s19
    $region7: #{tpu_custom_call.1} parent=1 // loop_footer_branch
      %18 = sbr.rel target = $region3
    $region8: #{tpu_custom_call.1} parent=1 // loop_exit
      _
    %1337 = vsyncpa [#allocation3], 1
    %s1338 = scalar_lea.sflag [#allocation3], 1
    %1339 = vsyncpa %s1338, 1
    %1340 = vsyncpa [#allocation5], 1

</llo_original>
